<compile_context>
chip_gen: v7x
topology: tpu7x:2x2x1
jax: 0.10.0
libtpu: 0.0.40
codegen_flags: <defaults>
</compile_context>

<pallas_src>
import functools

import jax
import jax.numpy as jnp
from jax.experimental import pallas as pl
from jax.experimental.pallas import tpu as pltpu


def _partial_sq_err_kernel(x_ref, t_ref, psum_ref, *, block_rows, total_rows,
                           mask_tail):
    """Per-block partial sum of squared error, folded to a (1, 8, 128) tile."""
    x = x_ref[...]
    t = t_ref[...]
    if x.dtype != jnp.float32:  # trace-time branch; no-op for f32 inputs
        x = x.astype(jnp.float32)
        t = t.astype(jnp.float32)
    diff = x - t
    sq = diff * diff
    if mask_tail:  # trace-time flag: only the ragged-grid case pays for this
        row0 = pl.program_id(0) * block_rows
        ridx = jax.lax.broadcasted_iota(jnp.int32, sq.shape, 0) + row0
        sq = jnp.where(ridx < total_rows, sq, 0.0)
    lane = sq.shape[-1]
    # Pure VPU vreg adds: fold groups of 8 sublanes onto one (8, 128) tile.
    folded = jnp.sum(sq.reshape(block_rows // 8, 8, lane), axis=0)
    psum_ref[...] = folded[None]  # full, unmasked 8x128 store


def content_loss(x, target, *, max_block_rows=8192):
    """Pallas equivalent of contentLoss.forward.

    Args:
      x:      jnp array (e.g. NCHW float32 feature map).
      target: jnp array, same shape as x (the detached target).

    Returns:
      (x_out, loss): x_out is x (pass-through, no copy),
                     loss == mean((x - target)**2) in float32.
    """
    assert x.shape == target.shape, (x.shape, target.shape)
    total = x.size
    lane = 128
    align = 16 * lane  # lane-aligned AND 16-row aligned (covers f32 & bf16 tiles)

    xf = x.reshape(-1)
    tf = target.reshape(-1)
    padded_total = -(-total // align) * align
    if padded_total != total:
        # Zero-pad both operands: pad rows contribute 0 to the squared error.
        pad = padded_total - total
        xf = jnp.pad(xf, (0, pad))
        tf = jnp.pad(tf, (0, pad))
    rows = padded_total // lane
    x2 = xf.reshape(rows, lane)
    t2 = tf.reshape(rows, lane)

    # Block size: as large as possible (amortize per-step overhead), multiple
    # of 16 rows, capped so 2 inputs x 2 pipeline buffers stay VMEM-friendly on
    # v7x (64 MiB physical). Default 8192 rows f32 -> 16 MiB pipelined.
    block_rows = min(int(max_block_rows), rows)
    block_rows = max(16, (block_rows // 16) * 16)
    grid = pl.cdiv(rows, block_rows)
    mask_tail = (rows % block_rows) != 0

    itemsize = x2.dtype.itemsize
    in_pipeline_bytes = 2 * 2 * block_rows * lane * itemsize
    out_pipeline_bytes = 2 * 8 * lane * 4
    vmem_limit = min(48 << 20,
                     max(32 << 20, in_pipeline_bytes + out_pipeline_bytes + (2 << 20)))

    cost = pl.CostEstimate(
        flops=3 * total,
        transcendentals=0,
        bytes_accessed=int(2 * rows * lane * itemsize + grid * 8 * lane * 4),
    )

    kernel = functools.partial(
        _partial_sq_err_kernel,
        block_rows=block_rows,
        total_rows=rows,
        mask_tail=mask_tail,
    )

    partials = pl.pallas_call(
        kernel,
        out_shape=jax.ShapeDtypeStruct((grid, 8, lane), jnp.float32),
        grid_spec=pltpu.PrefetchScalarGridSpec(
            num_scalar_prefetch=0,
            grid=(grid,),
            in_specs=[
                pl.BlockSpec((block_rows, lane), lambda i: (i, 0)),
                pl.BlockSpec((block_rows, lane), lambda i: (i, 0)),
            ],
            # Each grid step owns a disjoint (1, 8, 128) output tile.
            out_specs=pl.BlockSpec((1, 8, lane), lambda i: (i, 0, 0)),
        ),
        compiler_params=pltpu.CompilerParams(
            # Independent per-block partials -> parallel axis (both TCs on v7x).
            dimension_semantics=("parallel",),
            vmem_limit_bytes=int(vmem_limit),
        ),
        cost_estimate=cost,
    )(x2, t2)

    loss = jnp.sum(partials) / jnp.float32(total)
    # forward() returns x unchanged; no kernel pass-through write needed.
    return x, loss


if __name__ == "__main__":
    key = jax.random.PRNGKey(0)
    kx, kt = jax.random.split(key)

    # Primary case: NCHW conv feature map, lane-aligned.
    N, C, H, W = 2, 4, 16, 16
    x = jax.random.normal(kx, (N, C, H, W), dtype=jnp.float32)
    target = jax.random.normal(kt, (N, C, H, W), dtype=jnp.float32)

    x_out, loss = content_loss(x, target)
    jax.block_until_ready((x_out, loss))

    ref_loss = jnp.mean((x - target) ** 2)
    assert jnp.allclose(loss, ref_loss, rtol=1e-5, atol=1e-6), (loss, ref_loss)
    assert jnp.array_equal(x_out, x)

    # Robustness case: non-lane-aligned shape (exercises the pad path).
    kx2, kt2 = jax.random.split(kt)
    x_odd = jax.random.normal(kx2, (1, 3, 13, 13), dtype=jnp.float32)
    t_odd = jax.random.normal(kt2, (1, 3, 13, 13), dtype=jnp.float32)
    _, loss_odd = content_loss(x_odd, t_odd)
    jax.block_until_ready(loss_odd)
    ref_odd = jnp.mean((x_odd - t_odd) ** 2)
    assert jnp.allclose(loss_odd, ref_odd, rtol=1e-5, atol=1e-6), (loss_odd, ref_odd)

    print("KERNEL_OK")
</pallas_src>

<mosaic_0001>
module attributes {stable_mosaic.version = 11 : i64} {
  func.func @_partial_sq_err_kernel(%arg0: i32, %arg1: memref<16x128xf32, #tpu.memory_space<vmem>>, %arg2: memref<16x128xf32, #tpu.memory_space<vmem>>, %arg3: memref<1x8x128xf32, #tpu.memory_space<vmem>>) attributes {dimension_semantics = [#tpu.dimension_semantics<parallel>], iteration_bounds = array<i64: 1>, scalar_prefetch = 0 : i64, scratch_operands = 0 : i64, tpu.core_type = #tpu.core_type<tc>, window_params = [{transform_indices = @transform_0, window_bounds = array<i64: 16, 128>}, {transform_indices = @transform_1, window_bounds = array<i64: 16, 128>}, {transform_indices = @transform_2, window_bounds = array<i64: 1, 8, 128>}]} {
    %c0 = arith.constant 0 : index
    %c0_0 = arith.constant 0 : index
    %0 = vector.load %arg1[%c0, %c0_0] : memref<16x128xf32, #tpu.memory_space<vmem>>, vector<16x128xf32>
    %c0_1 = arith.constant 0 : index
    %c0_2 = arith.constant 0 : index
    %1 = vector.load %arg2[%c0_1, %c0_2] : memref<16x128xf32, #tpu.memory_space<vmem>>, vector<16x128xf32>
    %2 = arith.subf %0, %1 : vector<16x128xf32>
    %3 = arith.mulf %2, %2 : vector<16x128xf32>
    %4 = vector.shape_cast %3 : vector<16x128xf32> to vector<2x8x128xf32>
    %cst = arith.constant dense<0.000000e+00> : vector<8x128xf32>
    %5 = vector.multi_reduction <add>, %4, %cst [0] : vector<2x8x128xf32> to vector<8x128xf32>
    %6 = vector.shape_cast %5 : vector<8x128xf32> to vector<1x8x128xf32>
    %c0_3 = arith.constant 0 : index
    %c0_4 = arith.constant 0 : index
    %c0_5 = arith.constant 0 : index
    %7 = vector.load %arg3[%c0_3, %c0_4, %c0_5] : memref<1x8x128xf32, #tpu.memory_space<vmem>>, vector<1x8x128xf32>
    tpu.vector_store %arg3[%c0_3, %c0_4, %c0_5], %6 {strides = array<i32>} : memref<1x8x128xf32, #tpu.memory_space<vmem>>, vector<1x8x128xf32>,
    return
  }
  func.func @transform_0(%arg0: i32) -> (i32, i32) {
    %c0_i32 = arith.constant 0 : i32
    %c0_i32_0 = arith.constant 0 : i32
    return %arg0, %c0_i32 : i32, i32
  }
  func.func @transform_1(%arg0: i32) -> (i32, i32) {
    %c0_i32 = arith.constant 0 : i32
    %c0_i32_0 = arith.constant 0 : i32
    return %arg0, %c0_i32 : i32, i32
  }
  func.func @transform_2(%arg0: i32) -> (i32, i32, i32) {
    %c0_i32 = arith.constant 0 : i32
    %c0_i32_0 = arith.constant 0 : i32
    %c0_i32_1 = arith.constant 0 : i32
    return %arg0, %c0_i32, %c0_i32_0 : i32, i32, i32
  }
}

</mosaic_0001>

<llo_original>
// kernel: tpu_custom_call.1
$region0: #{tpu_custom_call.1}
  #allocation0 [shape = 'u32[]', space=smem, size = 0x4, offset = 0x4, fixed_abs, tag = 'smem constant byte address 0x4 - core index']
  #allocation1 [shape = 'u32[144,128]{1,0:T(1,128)}', space=vmem, size = 0x12000, scoped, tag = 'internal scratch']
  %s0 = inlined_call_operand.hbm [shape: f32[16,128], index: 0, kind: input, shape index: {}]
  %s1 = inlined_call_operand.hbm [shape: f32[16,128], index: 1, kind: input, shape index: {}]
  %s2 = inlined_call_operand.hbm [shape: f32[1,8,128], index: 2, kind: output, shape index: {}]
  %s3 = sld [smem:[#allocation0]]
  $region26: #{tpu_custom_call.1} parent=0
    _
  %s5 = ssub.s32 1, %s3
  %s6 = scalar_select 0, %s5, %s3
  $region1: #{tpu_custom_call.1} parent=0
    #allocation2 [shape = 'u8[8192]{0}', space=vmem, size = 0x2000, scoped, tag = 'input window, operand 0, single buffered']
    #allocation3 [shape = 's32[1]{0}', space=sflag, size = 0x4, scoped, tag = 'scoped memory for tpu_custom_call.1']
    #allocation4 [shape = 's32[1]{0}', space=sflag, size = 0x4, scoped, tag = 'scoped memory for tpu_custom_call.1']
    #allocation5 [shape = 'u8[8192]{0}', space=vmem, size = 0x2000, scoped, tag = 'input window, operand 1, single buffered']
    #allocation6 [shape = 's32[1]{0}', space=sflag, size = 0x4, scoped, tag = 'scoped memory for tpu_custom_call.1']
    #allocation7 [shape = 'u8[4096]{0}', space=vmem, size = 0x1000, scoped, tag = 'output window, operand 0, single buffered']
    %7 = vsyncpa [#allocation3], 0
    %8 = vsyncpa [#allocation6], 0
    %9 = vsyncpa [#allocation4], 0
    // Predicated region
    $region2: #{tpu_custom_call.1} parent=1 // pred_check
      _
    $region3: #{tpu_custom_call.1} parent=1 // pred_check_branch
      %11 = sbr.rel (0) target = $region5
    $region4: #{tpu_custom_call.1} parent=1 // pred_region
      %s13 = ssub.s32 256, 256
      %14 = vsyncadd [#allocation3], %s13
      %s15 = sshll.u32 [#allocation2], 4
      %s16 = int_to_ptr.vmem [resolvable:$true] %s15
      %21 = dma.hbm_to_vmem [thread:$0]  %s0, 256, %s16, [#allocation3], 128, 128, 8
    $region5: #{tpu_custom_call.1} parent=1 // pred_fallthru
      _
    // Predicated region
    $region6: #{tpu_custom_call.1} parent=1 // pred_check
      _
    $region7: #{tpu_custom_call.1} parent=1 // pred_check_branch
      %23 = sbr.rel (0) target = $region9
    $region8: #{tpu_custom_call.1} parent=1 // pred_region
      %s25 = ssub.s32 256, 256
      %26 = vsyncadd [#allocation6], %s25
      %s27 = sshll.u32 [#allocation5], 4
      %s28 = int_to_ptr.vmem [resolvable:$true] %s27
      %33 = dma.hbm_to_vmem [thread:$0]  %s1, 256, %s28, [#allocation6], 128, 128, 8
    $region9: #{tpu_custom_call.1} parent=1 // pred_fallthru
      _
    // Predicated region
    $region10: #{tpu_custom_call.1} parent=1 // pred_check
      _
    $region11: #{tpu_custom_call.1} parent=1 // pred_check_branch
      %35 = sbr.rel (0) target = $region13
    $region12: #{tpu_custom_call.1} parent=1 // pred_region
      %36 = dma.done [#allocation3], 256
    $region13: #{tpu_custom_call.1} parent=1 // pred_fallthru
      _
    // Predicated region
    $region14: #{tpu_custom_call.1} parent=1 // pred_check
      _
    $region15: #{tpu_custom_call.1} parent=1 // pred_check_branch
      %38 = sbr.rel (0) target = $region17
    $region16: #{tpu_custom_call.1} parent=1 // pred_region
      %39 = dma.done [#allocation6], 256
    $region17: #{tpu_custom_call.1} parent=1 // pred_fallthru
      _
    %v40 = vld [vmem:[#allocation2] sm:$0xff]
    %v41 = vld [vmem:[#allocation2 + $0x8] sm:$0xff]
    %v42 = vld [vmem:[#allocation5] sm:$0xff]
    %v43 = vld [vmem:[#allocation5 + $0x8] sm:$0xff]
    %v44 = vsub.f32 %v40, %v42
    %v45 = vsub.f32 %v41, %v43
    %v46 = vmul.f32 %v44, %v44
    %v47 = vmul.f32 %v45, %v45
    %v48 = vadd.f32 %v46, %v47
    %49 = vst [vmem:[#allocation7] sm:$0xff] %v48
    // Predicated region
    $region18: #{tpu_custom_call.1} parent=1 // pred_check
      _
    $region19: #{tpu_custom_call.1} parent=1 // pred_check_branch
      %51 = sbr.rel (0) target = $region21
    $region20: #{tpu_custom_call.1} parent=1 // pred_region
      %s53 = ssub.s32 128, 128
      %54 = vsyncadd [#allocation4], %s53
      %s56 = sshll.u32 [#allocation7], 4
      %s57 = int_to_ptr.vmem [resolvable:$true] %s56
      %59 = dma.vmem_to_hbm [thread:$0]  %s57, 128, %s2, [#allocation4]
    $region21: #{tpu_custom_call.1} parent=1 // pred_fallthru
      _
    // Predicated region
    $region22: #{tpu_custom_call.1} parent=1 // pred_check
      _
    $region23: #{tpu_custom_call.1} parent=1 // pred_check_branch
      %61 = sbr.rel (0) target = $region25
    $region24: #{tpu_custom_call.1} parent=1 // pred_region
      %62 = dma.done [#allocation4], 128
    $region25: #{tpu_custom_call.1} parent=1 // pred_fallthru
      _
    %63 = vsyncpa [#allocation3], 1
    %64 = vsyncpa [#allocation6], 1
    %65 = vsyncpa [#allocation4], 1

</llo_original>
